<compile_context>
chip_gen: v5e
topology: v5e:2x2
jax: 0.10.0
libtpu: 0.0.40
codegen_flags: <defaults>
</compile_context>

<pallas_src>
import functools
import math

import jax
import jax.numpy as jnp
from jax.experimental import pallas as pl
from jax.experimental.pallas import tpu as pltpu

VMEM = pltpu.MemorySpace.VMEM
BN_EPS = 1e-5
LANE = 128


def _round_up(v, m):
    return ((v + m - 1) // m) * m


def _vmem_limit(in_arrays, out_bytes):
    in_bytes = sum(math.prod(a.shape) * a.dtype.itemsize for a in in_arrays)
    total = in_bytes + int(out_bytes)
    # resident set + temporaries/headroom; floor 16 MiB, cap 48 MiB (v7x-safe)
    return int(min(max(3 * total + (8 << 20), 16 << 20), 48 << 20))


# ----------------------------- kernels ---------------------------------------------
def _make_eval_kernel(num_layers):
    """Eval forward: the reference returns res[-1] (final conv output), so the
    per-layer lin logits, confidence overrides and AE reconstruction are dead
    compute and skipped entirely."""
    L = num_layers

    def kernel(adj_ref, x_ref, conv_w_ref, conv_b_ref, bn_ref, out_ref):
        adj = adj_ref[...]                       # bf16 (N, N), VMEM-resident
        x = x_ref[...]                           # f32  (N, P)
        for n in range(L):
            xb = x.astype(jnp.bfloat16)
            # TODO(synk): `myConv` source not provided; approximated as GCN
            # propagation A_hat @ X @ W + b (node_confidence unused here).
            agg = jnp.dot(adj, xb, preferred_element_type=jnp.float32)
            h = jnp.dot(agg.astype(jnp.bfloat16), conv_w_ref[n],
                        preferred_element_type=jnp.float32)
            out = h + conv_b_ref[n]
            if n < L - 1:
                bn = bn_ref[n]                   # (4, P): gamma, beta, mean, var
                inv = jax.lax.rsqrt(bn[3:4, :] + BN_EPS)
                x = jnp.maximum((out - bn[2:3, :]) * inv * bn[0:1, :] + bn[1:2, :],
                                0.0)
            else:
                out_ref[...] = out

    return kernel


def _make_train_kernel(num_layers, ae_flag, mse_divisors):
    """Training forward: per-layer lin logits (+ confidence overrides) written to
    res, conv stack with optional tied-weight auto-encoder MSE accumulated
    in-register across layers."""
    L = num_layers

    def kernel(*refs):
        if ae_flag:
            (adj_ref, x_ref, tgt_ref, pseudo_ref, tmask_ref, pmask_ref,
             lin_w_ref, lin_b_ref, conv_w_ref, conv_wt_ref, conv_b_ref, bn_ref,
             res_ref, loss_ref) = refs
        else:
            (adj_ref, x_ref, tgt_ref, pseudo_ref, tmask_ref, pmask_ref,
             lin_w_ref, lin_b_ref, conv_w_ref, conv_b_ref, bn_ref,
             res_ref) = refs

        adj = adj_ref[...]                       # bf16 (N, N)
        x = x_ref[...]                           # f32  (N, P)
        tgt = tgt_ref[...]                       # (N, P)
        pseudo = pseudo_ref[...]                 # (N, P)
        tmask = tmask_ref[...] > 0.5             # (N, 1)
        pmask = pmask_ref[...] > 0.5             # (N, 1)

        ae_loss = jnp.zeros((1, 1), jnp.float32)

        for n in range(L):
            xb = x.astype(jnp.bfloat16)          # hoisted: reused by lin & adj dots

            # per-layer node logits (MXU, bf16 in / f32 acc)
            logits = jnp.dot(xb, lin_w_ref[n],
                             preferred_element_type=jnp.float32) + lin_b_ref[n]
            if n < L - 1:
                # train targets first; pseudo-labels win where both masks are set
                # (matches the reference's assignment order)
                logits = jnp.where(tmask, tgt, logits)
                logits = jnp.where(pmask, pseudo, logits)
            res_ref[n] = logits

            # myConv: propagation + linear (+ tied-weight AE reconstruction)
            agg = jnp.dot(adj, xb, preferred_element_type=jnp.float32)     # (N, P)
            h = jnp.dot(agg.astype(jnp.bfloat16), conv_w_ref[n],
                        preferred_element_type=jnp.float32)                # (N, P)
            out = h + conv_b_ref[n]

            if ae_flag:
                # pre-transposed W -> plain NN matmul (no in-kernel transpose)
                recon = jnp.dot(h.astype(jnp.bfloat16), conv_wt_ref[n],
                                preferred_element_type=jnp.float32)        # (N, P)
                d = recon - agg                  # padded columns are exactly zero
                sq = jnp.sum(d * d, axis=1, keepdims=True)                 # (N, 1)
                ae_loss = ae_loss + (jnp.sum(sq, axis=0, keepdims=True)
                                     / mse_divisors[n])

            if n < L - 1:
                bn = bn_ref[n]
                inv = jax.lax.rsqrt(bn[3:4, :] + BN_EPS)
                x = jnp.maximum((out - bn[2:3, :]) * inv * bn[0:1, :] + bn[1:2, :],
                                0.0)
                # TODO(synk): train-mode dropout omitted (no clean in-kernel RNG
                # semantics match to torch.nn.functional.dropout here).
            else:
                res_ref[L] = out

        if ae_flag:
            loss_ref[...] = ae_loss

    return kernel


# ----------------------------- parameter packing ------------------------------------
def pack_params(params, input_dim, hidden_dim, output_dim, num_class):
    """Pad every feature dim to a common lane-dense width P and stack per-layer
    params into a handful of (L, ...) arrays.  Weights are stored bf16 (MXU
    inputs); bias/BN stay f32.  Done ONCE outside the per-call path."""
    P = _round_up(max(input_dim, hidden_dim, output_dim, num_class, 1), LANE)
    L = len(params["conv_w"])

    def pad_mat(w):
        return jnp.pad(w, ((0, P - w.shape[0]), (0, P - w.shape[1])))

    def pad_row(b, fill=0.0):
        b = b.reshape(1, -1)
        return jnp.pad(b, ((0, 0), (0, P - b.shape[-1])), constant_values=fill)

    packed = {
        "lin_w": jnp.stack([pad_mat(w) for w in params["lin_w"]]).astype(jnp.bfloat16),
        "lin_b": jnp.stack([pad_row(b) for b in params["lin_b"]]),
        "conv_w": jnp.stack([pad_mat(w) for w in params["conv_w"]]).astype(jnp.bfloat16),
        "conv_wt": jnp.stack([pad_mat(w.T) for w in params["conv_w"]]).astype(jnp.bfloat16),
        "conv_b": jnp.stack([pad_row(b) for b in params["conv_b"]]),
        # BN rows: 0=gamma, 1=beta, 2=mean, 3=var (var padded with 1.0)
        "bn": jnp.stack([
            jnp.concatenate([pad_row(params["bn_g"][n]),
                             pad_row(params["bn_b"][n]),
                             pad_row(params["bn_mean"][n]),
                             pad_row(params["bn_var"][n], fill=1.0)], axis=0)
            for n in range(L - 1)]),
    }
    return packed


# ----------------------------- model wrapper ----------------------------------------
@functools.partial(
    jax.jit,
    static_argnames=("input_dim", "hidden_dim", "num_class", "training",
                     "auto_encoder_loss_flag", "soft_flag"))
def our_model_forward(packed, x_feat, adj_bf16, y, node_pseudolabel, train_mask, *,
                      input_dim, hidden_dim, num_class, training=False,
                      auto_encoder_loss_flag=True, soft_flag=True):
    L, P, _ = packed["conv_w"].shape
    N = x_feat.shape[0]

    adj = adj_bf16.astype(jnp.bfloat16)          # no-op when caller caches bf16
    x_pad = jnp.pad(x_feat.astype(jnp.float32), ((0, 0), (0, P - input_dim)))

    if not training:
        # Eval specialization: conv path only, single lane-dense (N, P) output.
        inputs = [adj, x_pad, packed["conv_w"], packed["conv_b"], packed["bn"]]
        vmem = _vmem_limit(inputs, N * P * 4)
        out = pl.pallas_call(
            _make_eval_kernel(L),
            out_shape=jax.ShapeDtypeStruct((N, P), jnp.float32),
            in_specs=[pl.BlockSpec(memory_space=VMEM)] * len(inputs),
            out_specs=pl.BlockSpec(memory_space=VMEM),
            compiler_params=pltpu.CompilerParams(vmem_limit_bytes=vmem),
        )(*inputs)
        return out[:, :num_class]

    # ------------------- training path -------------------
    # one_hot to padded width P directly (columns >= num_class stay zero)
    tgt = jax.nn.one_hot(y, P, dtype=jnp.float32)
    pmask_b = node_pseudolabel >= 0
    pseudo = (jax.nn.one_hot(jnp.where(pmask_b, node_pseudolabel, 0), P,
                             dtype=jnp.float32)
              * pmask_b[:, None].astype(jnp.float32))
    tmask_f = train_mask.reshape(N, 1).astype(jnp.float32)
    pmask_f = pmask_b.reshape(N, 1).astype(jnp.float32)

    # AE MSE normalization uses the TRUE (un-padded) per-layer in_channels.
    conv_in = (input_dim,) + (hidden_dim,) * (L - 1)
    divisors = tuple(float(N * c) for c in conv_in)

    inputs = [adj, x_pad, tgt, pseudo, tmask_f, pmask_f,
              packed["lin_w"], packed["lin_b"], packed["conv_w"]]
    if auto_encoder_loss_flag:
        inputs.append(packed["conv_wt"])
    inputs += [packed["conv_b"], packed["bn"]]

    res_bytes = (L + 1) * N * P * 4
    vmem = _vmem_limit(inputs, res_bytes + 4)

    if auto_encoder_loss_flag:
        res_pad, ae = pl.pallas_call(
            _make_train_kernel(L, True, divisors),
            out_shape=(jax.ShapeDtypeStruct((L + 1, N, P), jnp.float32),
                       jax.ShapeDtypeStruct((1, 1), jnp.float32)),
            in_specs=[pl.BlockSpec(memory_space=VMEM)] * len(inputs),
            out_specs=(pl.BlockSpec(memory_space=VMEM),
                       pl.BlockSpec(memory_space=VMEM)),
            compiler_params=pltpu.CompilerParams(vmem_limit_bytes=vmem),
        )(*inputs)
        res = res_pad[:, :, :num_class]
        ae_loss = ae[0, 0]
        return (res, ae_loss) if soft_flag else (res[-1], ae_loss)

    res_pad = pl.pallas_call(
        _make_train_kernel(L, False, divisors),
        out_shape=jax.ShapeDtypeStruct((L + 1, N, P), jnp.float32),
        in_specs=[pl.BlockSpec(memory_space=VMEM)] * len(inputs),
        out_specs=pl.BlockSpec(memory_space=VMEM),
        compiler_params=pltpu.CompilerParams(vmem_limit_bytes=vmem),
    )(*inputs)
    res = res_pad[:, :, :num_class]
    return res if soft_flag else res[-1]


# ----------------------------- parameters -------------------------------------------
def init_params(input_dim, hidden_dim, output_dim, num_layers, key):
    keys = jax.random.split(key, 2 * num_layers)
    conv_in = [input_dim] + [hidden_dim] * (num_layers - 1)
    conv_out = [hidden_dim] * (num_layers - 1) + [output_dim]
    lin_in = [input_dim] + [hidden_dim] * (num_layers - 1)

    params = {
        "conv_w": [0.1 * jax.random.normal(keys[i], (ci, co), jnp.float32)
                   for i, (ci, co) in enumerate(zip(conv_in, conv_out))],
        "conv_b": [jnp.zeros((co,), jnp.float32) for co in conv_out],
        "lin_w": [0.1 * jax.random.normal(keys[num_layers + i], (li, output_dim),
                                          jnp.float32)
                  for i, li in enumerate(lin_in)],
        "lin_b": [jnp.zeros((output_dim,), jnp.float32) for _ in lin_in],
        # BatchNorm1d defaults: gamma=1, beta=0, running_mean=0, running_var=1
        "bn_g": [jnp.ones((hidden_dim,), jnp.float32) for _ in range(num_layers - 1)],
        "bn_b": [jnp.zeros((hidden_dim,), jnp.float32) for _ in range(num_layers - 1)],
        "bn_mean": [jnp.zeros((hidden_dim,), jnp.float32) for _ in range(num_layers - 1)],
        "bn_var": [jnp.ones((hidden_dim,), jnp.float32) for _ in range(num_layers - 1)],
    }
    return params


# ----------------------------- demo --------------------------------------------------
def build_ring_adjacency(n):
    a = jnp.eye(n, dtype=jnp.float32)
    idx = jnp.arange(n)
    a = a.at[idx, (idx + 1) % n].set(1.0)
    a = a.at[(idx + 1) % n, idx].set(1.0)
    deg = jnp.sum(a, axis=1)
    dinv = 1.0 / jnp.sqrt(deg)
    return a * dinv[:, None] * dinv[None, :]


if __name__ == "__main__":
    num_nodes = 16
    input_dim = 8
    hidden_dim = 32
    output_dim = 4          # == num_class
    num_layers = 3

    key = jax.random.PRNGKey(0)
    kx, ky, kp1, kp2, kt = jax.random.split(key, 5)

    x_feat = jax.random.normal(kx, (num_nodes, input_dim), jnp.float32)
    y = jax.random.randint(ky, (num_nodes,), 0, output_dim)
    node_pseudolabel = jnp.where(
        jax.random.uniform(kp1, (num_nodes,)) < 0.3,
        jax.random.randint(kp2, (num_nodes,), 0, output_dim), -1)
    train_mask = jax.random.uniform(kt, (num_nodes,)) < 0.4

    # Persistent bf16 adjacency: cast ONCE, reused across forward calls.
    adj_bf16 = build_ring_adjacency(num_nodes).astype(jnp.bfloat16)

    params = init_params(input_dim, hidden_dim, output_dim, num_layers,
                         jax.random.PRNGKey(42))
    # Pad/stack parameters ONCE (lane-dense width, stacked per-layer arrays).
    packed = pack_params(params, input_dim, hidden_dim, output_dim, output_dim)

    # Eval path: specialized kernel, conv stack only, returns res[-1].
    out = our_model_forward(packed, x_feat, adj_bf16, y, node_pseudolabel, train_mask,
                            input_dim=input_dim, hidden_dim=hidden_dim,
                            num_class=output_dim, training=False,
                            auto_encoder_loss_flag=True, soft_flag=True)
    out = jax.block_until_ready(out)
    assert out.shape == (num_nodes, output_dim)

    # Training path: stacked per-layer logits + fused auto-encoder loss.
    res, ae_loss = our_model_forward(packed, x_feat, adj_bf16, y, node_pseudolabel,
                                     train_mask, input_dim=input_dim,
                                     hidden_dim=hidden_dim, num_class=output_dim,
                                     training=True, auto_encoder_loss_flag=True,
                                     soft_flag=True)
    res = jax.block_until_ready(res)
    assert res.shape == (num_layers + 1, num_nodes, output_dim)
    assert ae_loss.shape == ()

    # Training path without the auto-encoder loss (no recon matmul compiled in).
    res_no_ae = our_model_forward(packed, x_feat, adj_bf16, y, node_pseudolabel,
                                  train_mask, input_dim=input_dim,
                                  hidden_dim=hidden_dim, num_class=output_dim,
                                  training=True, auto_encoder_loss_flag=False,
                                  soft_flag=True)
    res_no_ae = jax.block_until_ready(res_no_ae)
    assert res_no_ae.shape == (num_layers + 1, num_nodes, output_dim)

    print("KERNEL_OK")
</pallas_src>

<mosaic_0001>
module attributes {stable_mosaic.version = 11 : i64} {
  func.func @kernel(%arg0: memref<16x16xbf16, #tpu.memory_space<vmem>>, %arg1: memref<16x128xf32, #tpu.memory_space<vmem>>, %arg2: memref<3x128x128xbf16, #tpu.memory_space<vmem>>, %arg3: memref<3x1x128xf32, #tpu.memory_space<vmem>>, %arg4: memref<2x4x128xf32, #tpu.memory_space<vmem>>, %arg5: memref<16x128xf32, #tpu.memory_space<vmem>>) attributes {dimension_semantics = [], scalar_prefetch = 0 : i64, scratch_operands = 0 : i64, tpu.core_type = #tpu.core_type<tc>} {
    %c0 = arith.constant 0 : index
    %c0_0 = arith.constant 0 : index
    %0 = vector.load %arg0[%c0, %c0_0] : memref<16x16xbf16, #tpu.memory_space<vmem>>, vector<16x16xbf16>
    %c0_1 = arith.constant 0 : index
    %c0_2 = arith.constant 0 : index
    %1 = vector.load %arg1[%c0_1, %c0_2] : memref<16x128xf32, #tpu.memory_space<vmem>>, vector<16x128xf32>
    %2 = arith.truncf %1 : vector<16x128xf32> to vector<16x128xbf16>
    %cst = arith.constant dense<0.000000e+00> : vector<16x128xf32>
    %3 = tpu.matmul %0, %2, %cst {dimension_numbers = #tpu.dot_dimension_numbers<[1], [0], [0], [1], [0, 0, 1, 1], [], []>} : vector<16x16xbf16>, vector<16x128xbf16>, vector<16x128xf32> -> vector<16x128xf32>
    %4 = arith.truncf %3 : vector<16x128xf32> to vector<16x128xbf16>
    %c0_3 = arith.constant 0 : index
    %c0_4 = arith.constant 0 : index
    %c0_5 = arith.constant 0 : index
    %5 = vector.load %arg2[%c0_3, %c0_4, %c0_5] : memref<3x128x128xbf16, #tpu.memory_space<vmem>>, vector<1x128x128xbf16>
    %6 = vector.shape_cast %5 : vector<1x128x128xbf16> to vector<128x128xbf16>
    %cst_6 = arith.constant dense<0.000000e+00> : vector<16x128xf32>
    %7 = tpu.matmul %4, %6, %cst_6 {dimension_numbers = #tpu.dot_dimension_numbers<[1], [0], [0], [1], [0, 0, 1, 1], [], []>} : vector<16x128xbf16>, vector<128x128xbf16>, vector<16x128xf32> -> vector<16x128xf32>
    %c0_7 = arith.constant 0 : index
    %c0_8 = arith.constant 0 : index
    %c0_9 = arith.constant 0 : index
    %8 = vector.load %arg3[%c0_7, %c0_8, %c0_9] : memref<3x1x128xf32, #tpu.memory_space<vmem>>, vector<1x1x128xf32>
    %9 = vector.shape_cast %8 : vector<1x1x128xf32> to vector<1x128xf32>
    %10 = vector.broadcast %9 : vector<1x128xf32> to vector<16x128xf32>
    %11 = arith.addf %7, %10 : vector<16x128xf32>
    %c0_10 = arith.constant 0 : index
    %c0_11 = arith.constant 0 : index
    %c0_12 = arith.constant 0 : index
    %12 = vector.load %arg4[%c0_10, %c0_11, %c0_12] : memref<2x4x128xf32, #tpu.memory_space<vmem>>, vector<1x4x128xf32>
    %13 = vector.shape_cast %12 : vector<1x4x128xf32> to vector<4x128xf32>
    %14 = vector.extract_strided_slice %13 {offsets = [3, 0], sizes = [1, 128], strides = [1, 1]} : vector<4x128xf32> to vector<1x128xf32>
    %cst_13 = arith.constant 9.99999974E-6 : f32
    %15 = vector.broadcast %cst_13 : f32 to vector<1x128xf32>
    %16 = arith.addf %14, %15 : vector<1x128xf32>
    %17 = math.rsqrt %16 : vector<1x128xf32>
    %18 = vector.extract_strided_slice %13 {offsets = [2, 0], sizes = [1, 128], strides = [1, 1]} : vector<4x128xf32> to vector<1x128xf32>
    %19 = vector.broadcast %18 : vector<1x128xf32> to vector<16x128xf32>
    %20 = arith.subf %11, %19 : vector<16x128xf32>
    %21 = vector.broadcast %17 : vector<1x128xf32> to vector<16x128xf32>
    %22 = arith.mulf %20, %21 : vector<16x128xf32>
    %23 = vector.extract_strided_slice %13 {offsets = [0, 0], sizes = [1, 128], strides = [1, 1]} : vector<4x128xf32> to vector<1x128xf32>
    %24 = vector.broadcast %23 : vector<1x128xf32> to vector<16x128xf32>
    %25 = arith.mulf %22, %24 : vector<16x128xf32>
    %26 = vector.extract_strided_slice %13 {offsets = [1, 0], sizes = [1, 128], strides = [1, 1]} : vector<4x128xf32> to vector<1x128xf32>
    %27 = vector.broadcast %26 : vector<1x128xf32> to vector<16x128xf32>
    %28 = arith.addf %25, %27 : vector<16x128xf32>
    %cst_14 = arith.constant 0.000000e+00 : f32
    %29 = vector.broadcast %cst_14 : f32 to vector<16x128xf32>
    %30 = arith.maximumf %28, %29 : vector<16x128xf32>
    %31 = arith.truncf %30 : vector<16x128xf32> to vector<16x128xbf16>
    %cst_15 = arith.constant dense<0.000000e+00> : vector<16x128xf32>
    %32 = tpu.matmul %0, %31, %cst_15 {dimension_numbers = #tpu.dot_dimension_numbers<[1], [0], [0], [1], [0, 0, 1, 1], [], []>} : vector<16x16xbf16>, vector<16x128xbf16>, vector<16x128xf32> -> vector<16x128xf32>
    %33 = arith.truncf %32 : vector<16x128xf32> to vector<16x128xbf16>
    %c1 = arith.constant 1 : index
    %c0_16 = arith.constant 0 : index
    %c0_17 = arith.constant 0 : index
    %34 = vector.load %arg2[%c1, %c0_16, %c0_17] : memref<3x128x128xbf16, #tpu.memory_space<vmem>>, vector<1x128x128xbf16>
    %35 = vector.shape_cast %34 : vector<1x128x128xbf16> to vector<128x128xbf16>
    %cst_18 = arith.constant dense<0.000000e+00> : vector<16x128xf32>
    %36 = tpu.matmul %33, %35, %cst_18 {dimension_numbers = #tpu.dot_dimension_numbers<[1], [0], [0], [1], [0, 0, 1, 1], [], []>} : vector<16x128xbf16>, vector<128x128xbf16>, vector<16x128xf32> -> vector<16x128xf32>
    %c1_19 = arith.constant 1 : index
    %c0_20 = arith.constant 0 : index
    %c0_21 = arith.constant 0 : index
    %37 = vector.load %arg3[%c1_19, %c0_20, %c0_21] : memref<3x1x128xf32, #tpu.memory_space<vmem>>, vector<1x1x128xf32>
    %38 = vector.shape_cast %37 : vector<1x1x128xf32> to vector<1x128xf32>
    %39 = vector.broadcast %38 : vector<1x128xf32> to vector<16x128xf32>
    %40 = arith.addf %36, %39 : vector<16x128xf32>
    %c1_22 = arith.constant 1 : index
    %c0_23 = arith.constant 0 : index
    %c0_24 = arith.constant 0 : index
    %41 = vector.load %arg4[%c1_22, %c0_23, %c0_24] : memref<2x4x128xf32, #tpu.memory_space<vmem>>, vector<1x4x128xf32>
    %42 = vector.shape_cast %41 : vector<1x4x128xf32> to vector<4x128xf32>
    %43 = vector.extract_strided_slice %42 {offsets = [3, 0], sizes = [1, 128], strides = [1, 1]} : vector<4x128xf32> to vector<1x128xf32>
    %cst_25 = arith.constant 9.99999974E-6 : f32
    %44 = vector.broadcast %cst_25 : f32 to vector<1x128xf32>
    %45 = arith.addf %43, %44 : vector<1x128xf32>
    %46 = math.rsqrt %45 : vector<1x128xf32>
    %47 = vector.extract_strided_slice %42 {offsets = [2, 0], sizes = [1, 128], strides = [1, 1]} : vector<4x128xf32> to vector<1x128xf32>
    %48 = vector.broadcast %47 : vector<1x128xf32> to vector<16x128xf32>
    %49 = arith.subf %40, %48 : vector<16x128xf32>
    %50 = vector.broadcast %46 : vector<1x128xf32> to vector<16x128xf32>
    %51 = arith.mulf %49, %50 : vector<16x128xf32>
    %52 = vector.extract_strided_slice %42 {offsets = [0, 0], sizes = [1, 128], strides = [1, 1]} : vector<4x128xf32> to vector<1x128xf32>
    %53 = vector.broadcast %52 : vector<1x128xf32> to vector<16x128xf32>
    %54 = arith.mulf %51, %53 : vector<16x128xf32>
    %55 = vector.extract_strided_slice %42 {offsets = [1, 0], sizes = [1, 128], strides = [1, 1]} : vector<4x128xf32> to vector<1x128xf32>
    %56 = vector.broadcast %55 : vector<1x128xf32> to vector<16x128xf32>
    %57 = arith.addf %54, %56 : vector<16x128xf32>
    %cst_26 = arith.constant 0.000000e+00 : f32
    %58 = vector.broadcast %cst_26 : f32 to vector<16x128xf32>
    %59 = arith.maximumf %57, %58 : vector<16x128xf32>
    %60 = arith.truncf %59 : vector<16x128xf32> to vector<16x128xbf16>
    %cst_27 = arith.constant dense<0.000000e+00> : vector<16x128xf32>
    %61 = tpu.matmul %0, %60, %cst_27 {dimension_numbers = #tpu.dot_dimension_numbers<[1], [0], [0], [1], [0, 0, 1, 1], [], []>} : vector<16x16xbf16>, vector<16x128xbf16>, vector<16x128xf32> -> vector<16x128xf32>
    %62 = arith.truncf %61 : vector<16x128xf32> to vector<16x128xbf16>
    %c2 = arith.constant 2 : index
    %c0_28 = arith.constant 0 : index
    %c0_29 = arith.constant 0 : index
    %63 = vector.load %arg2[%c2, %c0_28, %c0_29] : memref<3x128x128xbf16, #tpu.memory_space<vmem>>, vector<1x128x128xbf16>
    %64 = vector.shape_cast %63 : vector<1x128x128xbf16> to vector<128x128xbf16>
    %cst_30 = arith.constant dense<0.000000e+00> : vector<16x128xf32>
    %65 = tpu.matmul %62, %64, %cst_30 {dimension_numbers = #tpu.dot_dimension_numbers<[1], [0], [0], [1], [0, 0, 1, 1], [], []>} : vector<16x128xbf16>, vector<128x128xbf16>, vector<16x128xf32> -> vector<16x128xf32>
    %c2_31 = arith.constant 2 : index
    %c0_32 = arith.constant 0 : index
    %c0_33 = arith.constant 0 : index
    %66 = vector.load %arg3[%c2_31, %c0_32, %c0_33] : memref<3x1x128xf32, #tpu.memory_space<vmem>>, vector<1x1x128xf32>
    %67 = vector.shape_cast %66 : vector<1x1x128xf32> to vector<1x128xf32>
    %68 = vector.broadcast %67 : vector<1x128xf32> to vector<16x128xf32>
    %69 = arith.addf %65, %68 : vector<16x128xf32>
    %c0_34 = arith.constant 0 : index
    %c0_35 = arith.constant 0 : index
    %70 = vector.load %arg5[%c0_34, %c0_35] : memref<16x128xf32, #tpu.memory_space<vmem>>, vector<16x128xf32>
    tpu.vector_store %arg5[%c0_34, %c0_35], %69 {strides = array<i32>} : memref<16x128xf32, #tpu.memory_space<vmem>>, vector<16x128xf32>,
    return
  }
}

</mosaic_0001>

<llo_original>
// kernel: our_model_forward.1
$region0: #{our_model_forward.1}
  #allocation0 [shape = 'u32[]', space=smem, size = 0x4, offset = 0x4, fixed_abs, tag = 'smem constant byte address 0x4 - core index']
  #allocation1 [shape = 'u32[72,128]{1,0:T(1,128)}', space=vmem, size = 0x9000, scoped, tag = 'internal scratch']
  %s0 = inlined_call_operand.vmem [shape: bf16[16,16], index: 0, kind: input, shape index: {}]
  %s1 = inlined_call_operand.vmem [shape: f32[16,128], index: 1, kind: input, shape index: {}]
  %s2 = inlined_call_operand.hbm [shape: bf16[3,128,128], index: 2, kind: input, shape index: {}]
  %s3 = inlined_call_operand.vmem [shape: f32[3,1,128], index: 3, kind: input, shape index: {}]
  %s4 = inlined_call_operand.vmem [shape: f32[2,4,128], index: 4, kind: input, shape index: {}]
  %s5 = inlined_call_operand.vmem [shape: f32[16,128], index: 5, kind: output, shape index: {}]
  %s6 = sld [smem:[#allocation0]]
  $region34: #{our_model_forward.1} parent=0
    _
  %s8 = ssub.s32 1, %s6
  %s9 = scalar_select 0, %s8, %s6
  $region1: #{our_model_forward.1} parent=0
    #allocation2 [shape = 'u8[98304]{0}', space=vmem, size = 0x18000, scoped, tag = 'input window, operand 2, single buffered']
    #allocation3 [shape = 's32[1]{0}', space=sflag, size = 0x4, scoped, tag = 'scoped memory for our_model_forward.1']
    %10 = vsyncpa [#allocation3], 0
    // Predicated region
    $region2: #{our_model_forward.1} parent=1 // pred_check
      _
    $region3: #{our_model_forward.1} parent=1 // pred_check_branch
      %12 = sbr.rel (0) target = $region5
    $region4: #{our_model_forward.1} parent=1 // pred_region
      _
    $region5: #{our_model_forward.1} parent=1 // pred_fallthru
      _
    // Predicated region
    $region6: #{our_model_forward.1} parent=1 // pred_check
      _
    $region7: #{our_model_forward.1} parent=1 // pred_check_branch
      %14 = sbr.rel (0) target = $region9
    $region8: #{our_model_forward.1} parent=1 // pred_region
      _
    $region9: #{our_model_forward.1} parent=1 // pred_fallthru
      _
    // Predicated region
    $region10: #{our_model_forward.1} parent=1 // pred_check
      _
    $region11: #{our_model_forward.1} parent=1 // pred_check_branch
      %16 = sbr.rel (0) target = $region13
    $region12: #{our_model_forward.1} parent=1 // pred_region
      %18 = vsyncadd [#allocation3], 0
      %s19 = sshll.u32 %s2, 4
      %s20 = int_to_ptr.hbm [resolvable:$true] %s19
      %s21 = sshll.u32 [#allocation2], 4
      %s22 = int_to_ptr.vmem [resolvable:$true] %s21
      %27 = dma.hbm_to_vmem [thread:$0]  %s20, 3072, %s22, [#allocation3], 64, 64, 4
    $region13: #{our_model_forward.1} parent=1 // pred_fallthru
      _
    // Predicated region
    $region14: #{our_model_forward.1} parent=1 // pred_check
      _
    $region15: #{our_model_forward.1} parent=1 // pred_check_branch
      %29 = sbr.rel (0) target = $region17
    $region16: #{our_model_forward.1} parent=1 // pred_region
      _
    $region17: #{our_model_forward.1} parent=1 // pred_fallthru
      _
    // Predicated region
    $region18: #{our_model_forward.1} parent=1 // pred_check
      _
    $region19: #{our_model_forward.1} parent=1 // pred_check_branch
      %31 = sbr.rel (0) target = $region21
    $region20: #{our_model_forward.1} parent=1 // pred_region
      _
    $region21: #{our_model_forward.1} parent=1 // pred_fallthru
      _
    // Predicated region
    $region22: #{our_model_forward.1} parent=1 // pred_check
      _
    $region23: #{our_model_forward.1} parent=1 // pred_check_branch
      %33 = sbr.rel (0) target = $region25
    $region24: #{our_model_forward.1} parent=1 // pred_region
      %35 = dma.done [#allocation3], 3072
    $region25: #{our_model_forward.1} parent=1 // pred_fallthru
      _
    %v37 = vld [vmem:[%s0] sm:$0xf]
    %v38 = vld [vmem:[%s0 + $0x4] sm:$0xf]
    %v39 = vld [vmem:[%s1] sm:$0xff]
    %v40 = vld [vmem:[%s1 + $0x8] sm:$0xff]
    %v41 = vpack.c.bf16 %v40, %v39
    %v44 = vunpack.c.l.b16 %v37
    %v45 = vunpack.c.l.b16 %v38
    %v46 = vpack.c.b16 %v45, %v44
    %vm47 = vcmask 130048
    %v49 = vsel %vm47, %v46, 0
    %51 = vmatpush.bf16.msra.mxu0 0
    %52 = vmatpush.bf16.msra.mxu0 0
    %53 = vmatpush.bf16.msra.mxu0 0
    %54 = vmatpush.bf16.msra.mxu0 0
    %55 = vmatpush.bf16.msra.mxu0 0
    %56 = vmatpush.bf16.msra.mxu0 0
    %57 = vmatpush.bf16.msra.mxu0 0
    %58 = vmatpush.bf16.msra.mxu0 %v41
    %59 = vmatmul.bf16.gmra.mxu0 %v49
    %v60 = vpop.f32.mrf.mxu0
    %v61 = vadd.f32 0.0, %v60
    %v62 = vpop.f32.mrf.mxu0
    %v63 = vadd.f32 0.0, %v62
    %64 = vdwg.mxu0
    %v65 = vpack.c.bf16 %v63, %v61
    %v66 = vld [vmem:[#allocation2] sm:$0xf]
    %v67 = vld [vmem:[#allocation2 + $0x4] sm:$0xf]
    %v68 = vld [vmem:[#allocation2 + $0x8] sm:$0xf]
    %v69 = vld [vmem:[#allocation2 + $0xc] sm:$0xf]
    %v70 = vld [vmem:[#allocation2 + $0x10] sm:$0xf]
    %v71 = vld [vmem:[#allocation2 + $0x14] sm:$0xf]
    %v72 = vld [vmem:[#allocation2 + $0x18] sm:$0xf]
    %v73 = vld [vmem:[#allocation2 + $0x1c] sm:$0xf]
    %v74 = vld [vmem:[#allocation2 + $0x20] sm:$0xf]
    %v75 = vld [vmem:[#allocation2 + $0x24] sm:$0xf]
    %v76 = vld [vmem:[#allocation2 + $0x28] sm:$0xf]
    %v77 = vld [vmem:[#allocation2 + $0x2c] sm:$0xf]
    %v78 = vld [vmem:[#allocation2 + $0x30] sm:$0xf]
    %v79 = vld [vmem:[#allocation2 + $0x34] sm:$0xf]
    %v80 = vld [vmem:[#allocation2 + $0x38] sm:$0xf]
    %v81 = vld [vmem:[#allocation2 + $0x3c] sm:$0xf]
    %v82 = vld [vmem:[%s3] sm:$0x1]
    %v84 = vperm.slane %v82, 0
    %v102 = vunpack.c.l.b16 %v66
    %v103 = vunpack.c.l.b16 %v67
    %v104 = vunpack.c.l.b16 %v68
    %v105 = vunpack.c.l.b16 %v69
    %v106 = vunpack.c.l.b16 %v70
    %v107 = vunpack.c.l.b16 %v71
    %v108 = vunpack.c.l.b16 %v72
    %v109 = vunpack.c.l.b16 %v73
    %v110 = vunpack.c.l.b16 %v74
    %v111 = vunpack.c.l.b16 %v75
    %v112 = vunpack.c.l.b16 %v76
    %v113 = vunpack.c.l.b16 %v77
    %v114 = vunpack.c.l.b16 %v78
    %v115 = vunpack.c.l.b16 %v79
    %v116 = vunpack.c.l.b16 %v80
    %v117 = vunpack.c.l.b16 %v81
    %v118 = vpack.c.b16 %v103, %v102
    %v119 = vpack.c.b16 %v105, %v104
    %v120 = vpack.c.b16 %v107, %v106
    %v121 = vpack.c.b16 %v109, %v108
    %v122 = vpack.c.b16 %v111, %v110
    %v123 = vpack.c.b16 %v113, %v112
    %v124 = vpack.c.b16 %v115, %v114
    %v125 = vpack.c.b16 %v117, %v116
    %134 = vmatpush.bf16.msra.mxu0 %v125
    %135 = vmatpush.bf16.msra.mxu0 %v124
    %136 = vmatpush.bf16.msra.mxu0 %v123
    %137 = vmatpush.bf16.msra.mxu0 %v122
    %138 = vmatpush.bf16.msra.mxu0 %v121
    %139 = vmatpush.bf16.msra.mxu0 %v120
    %140 = vmatpush.bf16.msra.mxu0 %v119
    %141 = vmatpush.bf16.msra.mxu0 %v118
    %142 = vmatmul.bf16.gmra.mxu0 %v65
    %v143 = vpop.f32.mrf.mxu0
    %v144 = vadd.f32 %v84, %v143
    %v145 = vpop.f32.mrf.mxu0
    %v146 = vadd.f32 %v84, %v145
    %147 = vdwg.mxu0
    %v148 = vld [vmem:[%s4] sm:$0xf]
    %v149 = vadd.f32 %v148, 1e-05
    %v150 = vrsqrt.pop %v149
    %v151 = vmul.f32 %v150, %v149
    %v152 = vmul.f32 %v151, %v150
    %v153 = vmul.f32 0.5, %v152
    %v154 = vsub.f32 1.5, %v153
    %v155 = vmul.f32 %v150, %v154
    %vm156 = vweird.f32 %v149
    %vm157 = vweird.f32 %v150
    %vm158 = vmor %vm156, %vm157
    %v159 = vsel %vm158, %v150, %v155
    %v160 = vperm.slane %v148, 2
    %v161 = vsub.f32 %v144, %v160
    %v162 = vsub.f32 %v146, %v160
    %v163 = vperm.slane %v159, 3
    %v164 = vmul.f32 %v161, %v163
    %v165 = vmul.f32 %v162, %v163
    %v166 = vperm.slane %v148, 0
    %v167 = vmul.f32 %v164, %v166
    %v168 = vmul.f32 %v165, %v166
    %v169 = vperm.slane %v148, 1
    %v170 = vadd.f32 %v167, %v169
    %v171 = vadd.f32 %v168, %v169
    %v172 = vmax.f32 %v170, 0.0
    %v173 = vmax.f32 %v171, 0.0
    %v174 = vpack.c.bf16 %v173, %v172
    %175 = vmatpush.bf16.msra.mxu0 0
    %176 = vmatpush.bf16.msra.mxu0 0
    %177 = vmatpush.bf16.msra.mxu0 0
    %178 = vmatpush.bf16.msra.mxu0 0
    %179 = vmatpush.bf16.msra.mxu0 0
    %180 = vmatpush.bf16.msra.mxu0 0
    %181 = vmatpush.bf16.msra.mxu0 0
    %182 = vmatpush.bf16.msra.mxu0 %v174
    %183 = vmatmul.bf16.gmra.mxu0 %v49
    %v184 = vpop.f32.mrf.mxu0
    %v185 = vadd.f32 0.0, %v184
    %v186 = vpop.f32.mrf.mxu0
    %v187 = vadd.f32 0.0, %v186
    %188 = vdwg.mxu0
    %v189 = vpack.c.bf16 %v187, %v185
    %s190 = scalar_lea.vmem [#allocation2], 64
    %v191 = vld [vmem:[%s190] sm:$0xf]
    %v192 = vld [vmem:[%s190 + $0x4] sm:$0xf]
    %v193 = vld [vmem:[%s190 + $0x8] sm:$0xf]
    %v194 = vld [vmem:[%s190 + $0xc] sm:$0xf]
    %v195 = vld [vmem:[%s190 + $0x10] sm:$0xf]
    %v196 = vld [vmem:[%s190 + $0x14] sm:$0xf]
    %v197 = vld [vmem:[%s190 + $0x18] sm:$0xf]
    %v198 = vld [vmem:[%s190 + $0x1c] sm:$0xf]
    %v199 = vld [vmem:[%s190 + $0x20] sm:$0xf]
    %v200 = vld [vmem:[%s190 + $0x24] sm:$0xf]
    %v201 = vld [vmem:[%s190 + $0x28] sm:$0xf]
    %v202 = vld [vmem:[%s190 + $0x2c] sm:$0xf]
    %v203 = vld [vmem:[%s190 + $0x30] sm:$0xf]
    %v204 = vld [vmem:[%s190 + $0x34] sm:$0xf]
    %v205 = vld [vmem:[%s190 + $0x38] sm:$0xf]
    %v206 = vld [vmem:[%s190 + $0x3c] sm:$0xf]
    %s207 = scalar_lea.vmem %s3, 1
    %v208 = vld [vmem:[%s207] sm:$0x1]
    %v210 = vperm.slane %v208, 0
    %v228 = vunpack.c.l.b16 %v191
    %v229 = vunpack.c.l.b16 %v192
    %v230 = vunpack.c.l.b16 %v193
    %v231 = vunpack.c.l.b16 %v194
    %v232 = vunpack.c.l.b16 %v195
    %v233 = vunpack.c.l.b16 %v196
    %v234 = vunpack.c.l.b16 %v197
    %v235 = vunpack.c.l.b16 %v198
    %v236 = vunpack.c.l.b16 %v199
    %v237 = vunpack.c.l.b16 %v200
    %v238 = vunpack.c.l.b16 %v201
    %v239 = vunpack.c.l.b16 %v202
    %v240 = vunpack.c.l.b16 %v203
    %v241 = vunpack.c.l.b16 %v204
    %v242 = vunpack.c.l.b16 %v205
    %v243 = vunpack.c.l.b16 %v206
    %v244 = vpack.c.b16 %v229, %v228
    %v245 = vpack.c.b16 %v231, %v230
    %v246 = vpack.c.b16 %v233, %v232
    %v247 = vpack.c.b16 %v235, %v234
    %v248 = vpack.c.b16 %v237, %v236
    %v249 = vpack.c.b16 %v239, %v238
    %v250 = vpack.c.b16 %v241, %v240
    %v251 = vpack.c.b16 %v243, %v242
    %260 = vmatpush.bf16.msra.mxu0 %v251
    %261 = vmatpush.bf16.msra.mxu0 %v250
    %262 = vmatpush.bf16.msra.mxu0 %v249
    %263 = vmatpush.bf16.msra.mxu0 %v248
    %264 = vmatpush.bf16.msra.mxu0 %v247
    %265 = vmatpush.bf16.msra.mxu0 %v246
    %266 = vmatpush.bf16.msra.mxu0 %v245
    %267 = vmatpush.bf16.msra.mxu0 %v244
    %268 = vmatmul.bf16.gmra.mxu0 %v189
    %v269 = vpop.f32.mrf.mxu0
    %v270 = vadd.f32 %v210, %v269
    %v271 = vpop.f32.mrf.mxu0
    %v272 = vadd.f32 %v210, %v271
    %273 = vdwg.mxu0
    %s274 = scalar_lea.vmem %s4, 4
    %v275 = vld [vmem:[%s274] sm:$0xf]
    %v276 = vadd.f32 %v275, 1e-05
    %v277 = vrsqrt.pop %v276
    %v278 = vmul.f32 %v277, %v276
    %v279 = vmul.f32 %v278, %v277
    %v280 = vmul.f32 0.5, %v279
    %v281 = vsub.f32 1.5, %v280
    %v282 = vmul.f32 %v277, %v281
    %vm283 = vweird.f32 %v276
    %vm284 = vweird.f32 %v277
    %vm285 = vmor %vm283, %vm284
    %v286 = vsel %vm285, %v277, %v282
    %v287 = vperm.slane %v275, 2
    %v288 = vsub.f32 %v270, %v287
    %v289 = vsub.f32 %v272, %v287
    %v290 = vperm.slane %v286, 3
    %v291 = vmul.f32 %v288, %v290
    %v292 = vmul.f32 %v289, %v290
    %v293 = vperm.slane %v275, 0
    %v294 = vmul.f32 %v291, %v293
    %v295 = vmul.f32 %v292, %v293
    %v296 = vperm.slane %v275, 1
    %v297 = vadd.f32 %v294, %v296
    %v298 = vadd.f32 %v295, %v296
    %v299 = vmax.f32 %v297, 0.0
    %v300 = vmax.f32 %v298, 0.0
    %v301 = vpack.c.bf16 %v300, %v299
    %302 = vmatpush.bf16.msra.mxu0 0
    %303 = vmatpush.bf16.msra.mxu0 0
    %304 = vmatpush.bf16.msra.mxu0 0
    %305 = vmatpush.bf16.msra.mxu0 0
    %306 = vmatpush.bf16.msra.mxu0 0
    %307 = vmatpush.bf16.msra.mxu0 0
    %308 = vmatpush.bf16.msra.mxu0 0
    %309 = vmatpush.bf16.msra.mxu0 %v301
    %310 = vmatmul.bf16.gmra.mxu0 %v49
    %v311 = vpop.f32.mrf.mxu0
    %v312 = vadd.f32 0.0, %v311
    %v313 = vpop.f32.mrf.mxu0
    %v314 = vadd.f32 0.0, %v313
    %315 = vdwg.mxu0
    %v316 = vpack.c.bf16 %v314, %v312
    %s317 = scalar_lea.vmem [#allocation2], 128
    %v318 = vld [vmem:[%s317] sm:$0xf]
    %v319 = vld [vmem:[%s317 + $0x4] sm:$0xf]
    %v320 = vld [vmem:[%s317 + $0x8] sm:$0xf]
    %v321 = vld [vmem:[%s317 + $0xc] sm:$0xf]
    %v322 = vld [vmem:[%s317 + $0x10] sm:$0xf]
    %v323 = vld [vmem:[%s317 + $0x14] sm:$0xf]
    %v324 = vld [vmem:[%s317 + $0x18] sm:$0xf]
    %v325 = vld [vmem:[%s317 + $0x1c] sm:$0xf]
    %v326 = vld [vmem:[%s317 + $0x20] sm:$0xf]
    %v327 = vld [vmem:[%s317 + $0x24] sm:$0xf]
    %v328 = vld [vmem:[%s317 + $0x28] sm:$0xf]
    %v329 = vld [vmem:[%s317 + $0x2c] sm:$0xf]
    %v330 = vld [vmem:[%s317 + $0x30] sm:$0xf]
    %v331 = vld [vmem:[%s317 + $0x34] sm:$0xf]
    %v332 = vld [vmem:[%s317 + $0x38] sm:$0xf]
    %v333 = vld [vmem:[%s317 + $0x3c] sm:$0xf]
    %s334 = scalar_lea.vmem %s3, 2
    %v335 = vld [vmem:[%s334] sm:$0x1]
    %v337 = vperm.slane %v335, 0
    %v355 = vunpack.c.l.b16 %v318
    %v356 = vunpack.c.l.b16 %v319
    %v357 = vunpack.c.l.b16 %v320
    %v358 = vunpack.c.l.b16 %v321
    %v359 = vunpack.c.l.b16 %v322
    %v360 = vunpack.c.l.b16 %v323
    %v361 = vunpack.c.l.b16 %v324
    %v362 = vunpack.c.l.b16 %v325
    %v363 = vunpack.c.l.b16 %v326
    %v364 = vunpack.c.l.b16 %v327
    %v365 = vunpack.c.l.b16 %v328
    %v366 = vunpack.c.l.b16 %v329
    %v367 = vunpack.c.l.b16 %v330
    %v368 = vunpack.c.l.b16 %v331
    %v369 = vunpack.c.l.b16 %v332
    %v370 = vunpack.c.l.b16 %v333
    %v371 = vpack.c.b16 %v356, %v355
    %v372 = vpack.c.b16 %v358, %v357
    %v373 = vpack.c.b16 %v360, %v359
    %v374 = vpack.c.b16 %v362, %v361
    %v375 = vpack.c.b16 %v364, %v363
    %v376 = vpack.c.b16 %v366, %v365
    %v377 = vpack.c.b16 %v368, %v367
    %v378 = vpack.c.b16 %v370, %v369
    %387 = vmatpush.bf16.msra.mxu0 %v378
    %388 = vmatpush.bf16.msra.mxu0 %v377
    %389 = vmatpush.bf16.msra.mxu0 %v376
    %390 = vmatpush.bf16.msra.mxu0 %v375
    %391 = vmatpush.bf16.msra.mxu0 %v374
    %392 = vmatpush.bf16.msra.mxu0 %v373
    %393 = vmatpush.bf16.msra.mxu0 %v372
    %394 = vmatpush.bf16.msra.mxu0 %v371
    %395 = vmatmul.bf16.gmra.mxu0 %v316
    %v396 = vpop.f32.mrf.mxu0
    %v397 = vadd.f32 %v337, %v396
    %v398 = vpop.f32.mrf.mxu0
    %v399 = vadd.f32 %v337, %v398
    %400 = vdwg.mxu0
    %401 = vst [vmem:[%s5] sm:$0xff] %v397
    %402 = vst [vmem:[%s5 + $0x8] sm:$0xff] %v399
    // Predicated region
    $region26: #{our_model_forward.1} parent=1 // pred_check
      _
    $region27: #{our_model_forward.1} parent=1 // pred_check_branch
      %404 = sbr.rel (0) target = $region29
    $region28: #{our_model_forward.1} parent=1 // pred_region
      _
    $region29: #{our_model_forward.1} parent=1 // pred_fallthru
      _
    // Predicated region
    $region30: #{our_model_forward.1} parent=1 // pred_check
      _
    $region31: #{our_model_forward.1} parent=1 // pred_check_branch
      %406 = sbr.rel (0) target = $region33
    $region32: #{our_model_forward.1} parent=1 // pred_region
      _
    $region33: #{our_model_forward.1} parent=1 // pred_fallthru
      _
    %407 = vsyncpa [#allocation3], 1

</llo_original>
